<compile_context>
chip_gen: v5e
topology: v5e:2x2
jax: 0.10.0
libtpu: 0.0.40
codegen_flags: <defaults>
</compile_context>

<pallas_src>
import jax
import jax.numpy as jnp
from jax.experimental import pallas as pl
from jax.experimental.pallas import tpu as pltpu


def _round_up(x, m):
    return (x + m - 1) // m * m


def _cdiv(a, b):
    return (a + b - 1) // b


def _hist_kernel(x_ref, w_ref, b_ref, o_ref):
    # x_ref: (t_n, 1, t_hw)   w_ref/b_ref: (1, B, 1)   o_ref: (t_n, B, t_hw)
    a = x_ref[...] * w_ref[...] + b_ref[...]            # broadcast -> (t_n, B, t_hw), VPU
    o_ref[...] = jnp.maximum(1.0 - jnp.abs(a), 0.0).astype(o_ref.dtype)


def histogram_net(x_nchw, weight, bias, bin_num, *, out_dtype=jnp.float32,
                  vmem_io_budget_bytes=16 * 1024 * 1024):
    """x_nchw: (N, 1, H, W); weight: (B,1,1,1); bias: (B,). Returns (N, B, H, W)."""
    N, C, H, W = x_nchw.shape
    assert C == 1, "HistogramNet expects a single input channel"
    B = int(bin_num)
    HW = H * W

    LANE, SUB = 128, 8
    ebytes = 4                                # f32 tiles in VMEM
    B_pad = _round_up(B, SUB)                 # out tile sublane padding
    # VMEM bytes per (image, lane-column) of one step's tiles: out block is
    # (t_n, B_pad, t_hw); the x block (t_n, 1, t_hw) pads 1 -> 8 sublanes.
    col_cost = ebytes * (B_pad + SUB)
    per_buf = vmem_io_budget_bytes // 2       # I/O tiles are double-buffered

    # --- lane tile: multiple of 128 (ragged tail OK) or the full row ---
    if HW % LANE == 0:
        t_hw = min(HW, max(LANE, (per_buf // col_cost) // LANE * LANE))
    elif HW * col_cost <= per_buf:
        t_hw = HW                             # full-dim block, always legal
    else:
        t_hw = max(LANE, (per_buf // col_cost) // LANE * LANE)

    # --- batch tile: fold several images per step (key for small images) ---
    t_n = int(min(max(1, per_buf // (t_hw * col_cost)), N))

    # v7x megacore: if a sizeable workload collapsed into a single grid step,
    # split it so both TensorCores get work (parallel axes shard across TCs).
    if _cdiv(N, t_n) * _cdiv(HW, t_hw) == 1 and N * B * HW * ebytes >= (2 << 20):
        if t_n >= 2:
            t_n = _cdiv(t_n, 2)
        elif t_hw >= 2 * LANE:
            t_hw = _round_up(_cdiv(t_hw, 2), LANE)

    # Pixels contiguous along the lane axis; no padding, no post-slice.
    x_flat = x_nchw.reshape(N, 1, HW).astype(jnp.float32)

    # Fold scale = bin_num - 1 (>= 0) into the affine map: (bin-sized host work).
    scale = jnp.float32(bin_num - 1)
    w3 = weight.reshape(1, B, 1).astype(jnp.float32) * scale
    b3 = bias.reshape(1, B, 1).astype(jnp.float32) * scale

    grid = (_cdiv(N, t_n), _cdiv(HW, t_hw))
    out_itemsize = jnp.dtype(out_dtype).itemsize
    cost = pl.CostEstimate(
        flops=5 * N * B * HW,
        transcendentals=0,
        bytes_accessed=(N * HW + 2 * B) * 4 + N * B * HW * out_itemsize,
    )

    out = pl.pallas_call(
        _hist_kernel,
        out_shape=jax.ShapeDtypeStruct((N, B, HW), out_dtype),
        grid_spec=pltpu.PrefetchScalarGridSpec(
            num_scalar_prefetch=0,
            grid=grid,
            in_specs=[
                pl.BlockSpec((t_n, 1, t_hw), lambda j, i: (j, 0, i)),   # pixels
                pl.BlockSpec((1, B, 1), lambda j, i: (0, 0, 0)),        # weight*scale
                pl.BlockSpec((1, B, 1), lambda j, i: (0, 0, 0)),        # bias*scale
            ],
            out_specs=pl.BlockSpec((t_n, B, t_hw), lambda j, i: (j, 0, i)),
        ),
        compiler_params=pltpu.CompilerParams(
            dimension_semantics=("parallel", "parallel"),
            # ~<=16 MiB of double-buffered tiles; safe headroom on all gens
            # (v5e/v6e: 128 MiB physical, v7x: 64 MiB physical).
            vmem_limit_bytes=32 * 1024 * 1024,
        ),
        cost_estimate=cost,
    )(x_flat, w3, b3)

    # (N, B, H*W) -> (N, B, H, W): already NCHW-ordered, free reshape.
    return out.reshape(N, B, H, W)


def _reference(x_nchw, weight, bias, bin_num):
    # Plain-JAX reference of the PyTorch forward (1x1 conv == per-pixel affine).
    w = weight.reshape(1, bin_num, 1, 1)
    b = bias.reshape(1, bin_num, 1, 1)
    a1 = x_nchw * w + b
    return jnp.maximum(1.0 - jnp.abs(a1) * (bin_num - 1), 0.0)


if __name__ == "__main__":
    bin_num = 8
    N, C, H, W = 2, 1, 16, 16

    key = jax.random.PRNGKey(0)
    x = jax.random.uniform(key, (N, C, H, W), dtype=jnp.float32)

    # HistogramNet.init_biased_conv1: weight = ones(B,1,1,1), bias = -arange(-1,1,2/B).
    # Built without a float-step arange to avoid the FP-rounding length pitfall.
    weight = jnp.ones((bin_num, 1, 1, 1), dtype=jnp.float32)
    bias = -(jnp.arange(bin_num, dtype=jnp.float32) * (2.0 / bin_num) - 1.0)

    out = jax.block_until_ready(histogram_net(x, weight, bias, bin_num))

    ref = _reference(x.astype(jnp.float32), weight, bias, bin_num)
    assert out.shape == (N, bin_num, H, W), out.shape
    assert jnp.allclose(out, ref, atol=1e-5, rtol=1e-5), "mismatch vs reference"

    print("KERNEL_OK")
</pallas_src>

<mosaic_0001>
module attributes {stable_mosaic.version = 11 : i64} {
  func.func @_hist_kernel(%arg0: i32, %arg1: i32, %arg2: memref<2x1x256xf32, #tpu.memory_space<vmem>>, %arg3: memref<1x8x1xf32, #tpu.memory_space<vmem>>, %arg4: memref<1x8x1xf32, #tpu.memory_space<vmem>>, %arg5: memref<2x8x256xf32, #tpu.memory_space<vmem>>) attributes {dimension_semantics = [#tpu.dimension_semantics<parallel>, #tpu.dimension_semantics<parallel>], iteration_bounds = array<i64: 1, 1>, scalar_prefetch = 0 : i64, scratch_operands = 0 : i64, tpu.core_type = #tpu.core_type<tc>, window_params = [{transform_indices = @transform_0, window_bounds = array<i64: 2, 1, 256>}, {pipeline_mode = #tpu.pipeline_mode<synchronous>, transform_indices = @transform_1, window_bounds = array<i64: 1, 8, 1>}, {pipeline_mode = #tpu.pipeline_mode<synchronous>, transform_indices = @transform_2, window_bounds = array<i64: 1, 8, 1>}, {transform_indices = @transform_3, window_bounds = array<i64: 2, 8, 256>}]} {
    %c0 = arith.constant 0 : index
    %c0_0 = arith.constant 0 : index
    %c0_1 = arith.constant 0 : index
    %0 = vector.load %arg2[%c0, %c0_0, %c0_1] : memref<2x1x256xf32, #tpu.memory_space<vmem>>, vector<2x1x256xf32>
    %c0_2 = arith.constant 0 : index
    %c0_3 = arith.constant 0 : index
    %c0_4 = arith.constant 0 : index
    %1 = vector.load %arg3[%c0_2, %c0_3, %c0_4] : memref<1x8x1xf32, #tpu.memory_space<vmem>>, vector<1x8x1xf32>
    %2 = vector.broadcast %0 : vector<2x1x256xf32> to vector<2x8x256xf32>
    %3 = vector.broadcast %1 : vector<1x8x1xf32> to vector<2x8x256xf32>
    %4 = arith.mulf %2, %3 : vector<2x8x256xf32>
    %c0_5 = arith.constant 0 : index
    %c0_6 = arith.constant 0 : index
    %c0_7 = arith.constant 0 : index
    %5 = vector.load %arg4[%c0_5, %c0_6, %c0_7] : memref<1x8x1xf32, #tpu.memory_space<vmem>>, vector<1x8x1xf32>
    %6 = vector.broadcast %5 : vector<1x8x1xf32> to vector<2x8x256xf32>
    %7 = arith.addf %4, %6 : vector<2x8x256xf32>
    %8 = math.absf %7 : vector<2x8x256xf32>
    %cst = arith.constant 1.000000e+00 : f32
    %9 = vector.broadcast %cst : f32 to vector<2x8x256xf32>
    %10 = arith.subf %9, %8 : vector<2x8x256xf32>
    %cst_8 = arith.constant 0.000000e+00 : f32
    %11 = vector.broadcast %cst_8 : f32 to vector<2x8x256xf32>
    %12 = arith.maximumf %10, %11 : vector<2x8x256xf32>
    %c0_9 = arith.constant 0 : index
    %c0_10 = arith.constant 0 : index
    %c0_11 = arith.constant 0 : index
    %13 = vector.load %arg5[%c0_9, %c0_10, %c0_11] : memref<2x8x256xf32, #tpu.memory_space<vmem>>, vector<2x8x256xf32>
    tpu.vector_store %arg5[%c0_9, %c0_10, %c0_11], %12 {strides = array<i32>} : memref<2x8x256xf32, #tpu.memory_space<vmem>>, vector<2x8x256xf32>,
    return
  }
  func.func @transform_0(%arg0: i32, %arg1: i32) -> (i32, i32, i32) {
    %c0_i32 = arith.constant 0 : i32
    %c0_i32_0 = arith.constant 0 : i32
    return %arg0, %c0_i32, %arg1 : i32, i32, i32
  }
  func.func @transform_1(%arg0: i32, %arg1: i32) -> (i32, i32, i32) {
    %c0_i32 = arith.constant 0 : i32
    %c0_i32_0 = arith.constant 0 : i32
    %c0_i32_1 = arith.constant 0 : i32
    %c0_i32_2 = arith.constant 0 : i32
    return %c0_i32, %c0_i32_0, %c0_i32_1 : i32, i32, i32
  }
  func.func @transform_2(%arg0: i32, %arg1: i32) -> (i32, i32, i32) {
    %c0_i32 = arith.constant 0 : i32
    %c0_i32_0 = arith.constant 0 : i32
    %c0_i32_1 = arith.constant 0 : i32
    %c0_i32_2 = arith.constant 0 : i32
    return %c0_i32, %c0_i32_0, %c0_i32_1 : i32, i32, i32
  }
  func.func @transform_3(%arg0: i32, %arg1: i32) -> (i32, i32, i32) {
    %c0_i32 = arith.constant 0 : i32
    %c0_i32_0 = arith.constant 0 : i32
    return %arg0, %c0_i32, %arg1 : i32, i32, i32
  }
}

</mosaic_0001>

<llo_original>
// kernel: tpu_custom_call.1
$region0: #{tpu_custom_call.1}
  #allocation0 [shape = 'u32[]', space=smem, size = 0x4, offset = 0x4, fixed_abs, tag = 'smem constant byte address 0x4 - core index']
  #allocation1 [shape = 'u32[72,128]{1,0:T(1,128)}', space=vmem, size = 0x9000, scoped, tag = 'internal scratch']
  %s0 = inlined_call_operand.vmem [shape: f32[2,1,256], index: 0, kind: input, shape index: {}]
  %s1 = inlined_call_operand.vmem [shape: f32[1,8,1], index: 1, kind: input, shape index: {}]
  %s2 = inlined_call_operand.vmem [shape: f32[1,8,1], index: 2, kind: input, shape index: {}]
  %s3 = inlined_call_operand.hbm [shape: f32[2,8,256], index: 3, kind: output, shape index: {}]
  %s4 = sld [smem:[#allocation0]]
  $region22: #{tpu_custom_call.1} parent=0
    _
  %s6 = ssub.s32 1, %s4
  %s7 = scalar_select 0, %s6, %s4
  $region1: #{tpu_custom_call.1} parent=0
    #allocation2 [shape = 'u8[16384]{0}', space=vmem, size = 0x4000, scoped, tag = 'output window, operand 0, single buffered']
    #allocation3 [shape = 's32[1]{0}', space=sflag, size = 0x4, scoped, tag = 'scoped memory for tpu_custom_call.1']
    %8 = vsyncpa [#allocation3], 0
    // Predicated region
    $region2: #{tpu_custom_call.1} parent=1 // pred_check
      _
    $region3: #{tpu_custom_call.1} parent=1 // pred_check_branch
      %10 = sbr.rel (0) target = $region5
    $region4: #{tpu_custom_call.1} parent=1 // pred_region
      _
    $region5: #{tpu_custom_call.1} parent=1 // pred_fallthru
      _
    // Predicated region
    $region6: #{tpu_custom_call.1} parent=1 // pred_check
      _
    $region7: #{tpu_custom_call.1} parent=1 // pred_check_branch
      %12 = sbr.rel (0) target = $region9
    $region8: #{tpu_custom_call.1} parent=1 // pred_region
      _
    $region9: #{tpu_custom_call.1} parent=1 // pred_fallthru
      _
    // Predicated region
    $region10: #{tpu_custom_call.1} parent=1 // pred_check
      _
    $region11: #{tpu_custom_call.1} parent=1 // pred_check_branch
      %14 = sbr.rel (0) target = $region13
    $region12: #{tpu_custom_call.1} parent=1 // pred_region
      _
    $region13: #{tpu_custom_call.1} parent=1 // pred_fallthru
      _
    %v15 = vld [vmem:[%s0] sm:$0x3]
    %v16 = vld [vmem:[%s0 + $0x2] sm:$0x3]
    %v17 = vld [vmem:[%s1] sm:$0xff]
    %v20 = vperm.slane %v15, 0
    %v21 = vperm.slane %v15, 1
    %v22 = vperm.slane %v16, 0
    %v23 = vperm.slane %v16, 1
    %29 = vset.pattern.permute.xlu0 0
    %30 = vperm.xlu0 %29, %v17
    %v31 = vpop.permute.xlu0 %30
    %v33 = vmul.f32 %v20, %v31
    %v34 = vmul.f32 %v21, %v31
    %v35 = vmul.f32 %v22, %v31
    %v36 = vmul.f32 %v23, %v31
    %v37 = vld [vmem:[%s2] sm:$0xff]
    %39 = vset.pattern.permute.xlu0 0
    %40 = vperm.xlu0 %39, %v37
    %v41 = vpop.permute.xlu0 %40
    %v43 = vadd.f32 %v33, %v41
    %v44 = vadd.f32 %v34, %v41
    %v45 = vadd.f32 %v35, %v41
    %v46 = vadd.f32 %v36, %v41
    %v47 = vand.u32 2147483647, %v43
    %v48 = vand.u32 2147483647, %v44
    %v49 = vand.u32 2147483647, %v45
    %v50 = vand.u32 2147483647, %v46
    %v51 = vsub.f32 1.0, %v47
    %v52 = vsub.f32 1.0, %v48
    %v53 = vsub.f32 1.0, %v49
    %v54 = vsub.f32 1.0, %v50
    %v55 = vmax.f32 %v51, 0.0
    %v56 = vmax.f32 %v52, 0.0
    %v57 = vmax.f32 %v53, 0.0
    %v58 = vmax.f32 %v54, 0.0
    %59 = vst [vmem:[#allocation2] sm:$0xff] %v55
    %60 = vst [vmem:[#allocation2 + $0x8] sm:$0xff] %v56
    %61 = vst [vmem:[#allocation2 + $0x10] sm:$0xff] %v57
    %62 = vst [vmem:[#allocation2 + $0x18] sm:$0xff] %v58
    // Predicated region
    $region14: #{tpu_custom_call.1} parent=1 // pred_check
      _
    $region15: #{tpu_custom_call.1} parent=1 // pred_check_branch
      %64 = sbr.rel (0) target = $region17
    $region16: #{tpu_custom_call.1} parent=1 // pred_region
      %66 = vsyncadd [#allocation3], 0
      %s67 = sshll.u32 [#allocation2], 4
      %s68 = int_to_ptr.vmem [resolvable:$true] %s67
      %s69 = sshll.u32 %s3, 4
      %s70 = int_to_ptr.hbm [resolvable:$true] %s69
      %75 = dma.vmem_to_hbm [thread:$0]  %s68, 512, %s70, [#allocation3], 256, 256, 16
    $region17: #{tpu_custom_call.1} parent=1 // pred_fallthru
      _
    // Predicated region
    $region18: #{tpu_custom_call.1} parent=1 // pred_check
      _
    $region19: #{tpu_custom_call.1} parent=1 // pred_check_branch
      %77 = sbr.rel (0) target = $region21
    $region20: #{tpu_custom_call.1} parent=1 // pred_region
      %79 = dma.done [#allocation3], 512
    $region21: #{tpu_custom_call.1} parent=1 // pred_fallthru
      _
    %80 = vsyncpa [#allocation3], 1

</llo_original>
